<compile_context>
chip_gen: v5e
topology: v5e:2x2
jax: 0.10.0
libtpu: 0.0.40
codegen_flags: <defaults>
</compile_context>

<pallas_src>
import jax
import jax.numpy as jnp
from jax import lax
from jax.experimental import pallas as pl
from jax.experimental.pallas import tpu as pltpu


def _round_up(n, m):
    return ((n + m - 1) // m) * m


def dqn_kernel(x_ref, eye_ref, cw1_ref, cb1_ref, cw2_ref, cb2_ref,
               w1_ref, b1_ref, w2_ref, b2_ref, q_ref):
    """One batch tile.  x_ref: (TB, S) batch-major; q_ref: (TB, A) batch-major.

    Intermediates are feature-major (features, TB): batch on the lane axis,
    so elementwise/tanh work is vreg-dense.  x is transposed once on the MXU
    with a small identity so neither the wrapper nor the XLU does a transpose.
    """
    bf16 = jnp.bfloat16
    f32 = jnp.float32

    # x^T (S, TB): identity(S,S) . x(TB,S)^T via dot_general contracting S.
    xT = lax.dot_general(
        eye_ref[...].astype(bf16), x_ref[...].astype(bf16),
        (((1,), (1,)), ((), ())), preferred_element_type=f32)        # (S, TB)

    # --- controller: fc1 -> relu -> fc2 -> tanh ---------------------------
    h = jnp.dot(cw1_ref[...].astype(bf16), xT.astype(bf16),
                preferred_element_type=f32) + cb1_ref[...]           # (H, TB)
    h = jnp.maximum(h, 0.0)
    mod = jnp.tanh(
        jnp.dot(cw2_ref[...].astype(bf16), h.astype(bf16),
                preferred_element_type=f32) + cb2_ref[...])          # (S, TB)

    # --- modulate input ----------------------------------------------------
    xm = xT * mod                                                    # (S, TB)

    # --- DQN head: fc1 -> relu -> fc2 --------------------------------------
    hid = jnp.dot(w1_ref[...].astype(bf16), xm.astype(bf16),
                  preferred_element_type=f32) + b1_ref[...]          # (H, TB)
    hid = jnp.maximum(hid, 0.0)

    # q (TB, A) batch-major: contract hid feature axis with w2 feature axis.
    q = lax.dot_general(
        hid.astype(bf16), w2_ref[...].astype(bf16),
        (((0,), (1,)), ((), ())), preferred_element_type=f32) + b2_ref[...]
    q_ref[...] = q.astype(q_ref.dtype)                               # (TB, A)


def dqn_forward(x, params, tb=None):
    """x: (B, state_dim) f32 batch-major.  Returns q: (B, action_dim) f32.

    params: nn.Linear layout weights (out, in) f32; biases cb1/cb2/b1 as
    (out, 1) columns, b2 as (1, out) row (all f32).
    """
    B, S = x.shape
    A, H = params["w2"].shape

    if tb is None:
        # Big lane-dense tile (amortizes ~0.35us per grid step), but at least
        # 2 grid steps for large batches so both v7x TensorCores get work.
        tb = max(128, min(4096, _round_up(pl.cdiv(B, 2), 128)))
    tb = min(tb, _round_up(B, 8))          # don't over-pad tiny batches
    grid = (pl.cdiv(B, tb),)

    eye = jnp.eye(S, dtype=jnp.float32)    # MXU-side transpose helper

    def resident(arr):
        # Whole tensor as one block, same block every grid step -> VMEM-resident.
        return pl.BlockSpec(arr.shape, lambda i: (0, 0))

    # Advisory cost estimate (per call): 4 layer matmuls + identity transpose.
    macs_per_sample = S * S + 3 * S * H + H * A
    nbytes = (x.size * x.dtype.itemsize + B * A * 4 + eye.size * 4 +
              sum(int(v.size) * v.dtype.itemsize for v in params.values()))
    cost = pl.CostEstimate(flops=2 * B * macs_per_sample,
                           transcendentals=B * S,
                           bytes_accessed=int(nbytes))

    q = pl.pallas_call(
        dqn_kernel,
        out_shape=jax.ShapeDtypeStruct((B, A), jnp.float32),
        grid_spec=pltpu.PrefetchScalarGridSpec(
            num_scalar_prefetch=0,
            grid=grid,
            in_specs=[
                pl.BlockSpec((tb, S), lambda i: (i, 0)),       # x tile (streamed)
                resident(eye),                                  # (S, S) identity
                resident(params["cw1"]), resident(params["cb1"]),  # controller.fc1
                resident(params["cw2"]), resident(params["cb2"]),  # controller.fc2
                resident(params["w1"]), resident(params["b1"]),    # fc1
                resident(params["w2"]), resident(params["b2"]),    # fc2
            ],
            out_specs=pl.BlockSpec((tb, A), lambda i: (i, 0)), # q tile (streamed)
        ),
        compiler_params=pltpu.CompilerParams(
            dimension_semantics=("parallel",)),                # megacore on v7x
        cost_estimate=cost,
    )(x, eye,
      params["cw1"], params["cb1"], params["cw2"], params["cb2"],
      params["w1"], params["b1"], params["w2"], params["b2"])
    return q


def init_params(key, state_dim, action_dim, hidden_dim=64):
    """Deterministic synthetic init. W: (out, in) f32; biases in kernel layout."""
    ks = jax.random.split(key, 8)

    def lin(kw, kb, fan_in, fan_out, b_shape):
        bound = 1.0 / jnp.sqrt(fan_in)
        w = jax.random.uniform(kw, (fan_out, fan_in), jnp.float32, -bound, bound)
        b = jax.random.uniform(kb, b_shape, jnp.float32, -bound, bound)
        return w, b

    cw1, cb1 = lin(ks[0], ks[1], state_dim, hidden_dim, (hidden_dim, 1))
    cw2, cb2 = lin(ks[2], ks[3], hidden_dim, state_dim, (state_dim, 1))
    w1, b1 = lin(ks[4], ks[5], state_dim, hidden_dim, (hidden_dim, 1))
    w2, b2 = lin(ks[6], ks[7], hidden_dim, action_dim, (1, action_dim))
    return dict(cw1=cw1, cb1=cb1, cw2=cw2, cb2=cb2, w1=w1, b1=b1, w2=w2, b2=b2)


def dqn_forward_ref_f32(x, p):
    """Pure f32 reference (same math as the PyTorch module)."""
    h = jnp.maximum(x @ p["cw1"].T + p["cb1"].T, 0.0)
    mod = jnp.tanh(h @ p["cw2"].T + p["cb2"].T)
    xm = x * mod
    hid = jnp.maximum(xm @ p["w1"].T + p["b1"].T, 0.0)
    return hid @ p["w2"].T + p["b2"]


def dqn_forward_ref_matched(x, p):
    """Reference mirroring the kernel's bf16-operand / f32-accumulate dots."""
    bf16, f32 = jnp.bfloat16, jnp.float32

    def mm(w, a):
        return jnp.dot(w.astype(bf16), a.astype(bf16), preferred_element_type=f32)

    xT = x.T.astype(bf16).astype(f32)                  # kernel's MXU identity-transpose
    h = jnp.maximum(mm(p["cw1"], xT) + p["cb1"], 0.0)
    mod = jnp.tanh(mm(p["cw2"], h) + p["cb2"])
    xm = xT * mod
    hid = jnp.maximum(mm(p["w1"], xm) + p["b1"], 0.0)
    q = jnp.dot(hid.astype(bf16).T, p["w2"].astype(bf16).T,
                preferred_element_type=f32) + p["b2"]
    return q


if __name__ == "__main__":
    B, STATE, ACTION, HIDDEN = 8, 16, 4, 32

    key = jax.random.PRNGKey(0)
    k_x, k_p, k_x2 = jax.random.split(key, 3)
    x = jax.random.normal(k_x, (B, STATE), dtype=jnp.float32)
    params = init_params(k_p, STATE, ACTION, HIDDEN)

    # Small-batch check (single grid step, tiny tile).
    q = dqn_forward(x, params)
    jax.block_until_ready(q)
    assert q.shape == (B, ACTION)
    assert jnp.allclose(q, dqn_forward_ref_matched(x, params), atol=1e-3, rtol=1e-3), \
        "mismatch vs bf16-matched reference (small)"
    assert jnp.allclose(q, dqn_forward_ref_f32(x, params), atol=5e-2, rtol=5e-2), \
        "mismatch vs f32 reference (small)"

    # Multi-step grid + ragged batch (weight residency + partial last tile).
    B2 = 300
    x2 = jax.random.normal(k_x2, (B2, STATE), dtype=jnp.float32)
    q2 = dqn_forward(x2, params, tb=128)               # grid = (3,), last tile partial
    jax.block_until_ready(q2)
    assert q2.shape == (B2, ACTION)
    assert jnp.allclose(q2, dqn_forward_ref_matched(x2, params), atol=1e-3, rtol=1e-3), \
        "mismatch vs bf16-matched reference (gridded)"
    assert jnp.allclose(q2, dqn_forward_ref_f32(x2, params), atol=5e-2, rtol=5e-2), \
        "mismatch vs f32 reference (gridded)"

    print("KERNEL_OK")
</pallas_src>

<mosaic_0001>
module attributes {stable_mosaic.version = 11 : i64} {
  func.func @dqn_kernel(%arg0: i32, %arg1: memref<8x16xf32, #tpu.memory_space<vmem>>, %arg2: memref<16x16xf32, #tpu.memory_space<vmem>>, %arg3: memref<32x16xf32, #tpu.memory_space<vmem>>, %arg4: memref<32x1xf32, #tpu.memory_space<vmem>>, %arg5: memref<16x32xf32, #tpu.memory_space<vmem>>, %arg6: memref<16x1xf32, #tpu.memory_space<vmem>>, %arg7: memref<32x16xf32, #tpu.memory_space<vmem>>, %arg8: memref<32x1xf32, #tpu.memory_space<vmem>>, %arg9: memref<4x32xf32, #tpu.memory_space<vmem>>, %arg10: memref<1x4xf32, #tpu.memory_space<vmem>>, %arg11: memref<8x4xf32, #tpu.memory_space<vmem>>) attributes {dimension_semantics = [#tpu.dimension_semantics<parallel>], iteration_bounds = array<i64: 1>, scalar_prefetch = 0 : i64, scratch_operands = 0 : i64, tpu.core_type = #tpu.core_type<tc>, window_params = [{transform_indices = @transform_0, window_bounds = array<i64: 8, 16>}, {pipeline_mode = #tpu.pipeline_mode<synchronous>, transform_indices = @transform_1, window_bounds = array<i64: 16, 16>}, {pipeline_mode = #tpu.pipeline_mode<synchronous>, transform_indices = @transform_2, window_bounds = array<i64: 32, 16>}, {pipeline_mode = #tpu.pipeline_mode<synchronous>, transform_indices = @transform_3, window_bounds = array<i64: 32, 1>}, {pipeline_mode = #tpu.pipeline_mode<synchronous>, transform_indices = @transform_4, window_bounds = array<i64: 16, 32>}, {pipeline_mode = #tpu.pipeline_mode<synchronous>, transform_indices = @transform_5, window_bounds = array<i64: 16, 1>}, {pipeline_mode = #tpu.pipeline_mode<synchronous>, transform_indices = @transform_6, window_bounds = array<i64: 32, 16>}, {pipeline_mode = #tpu.pipeline_mode<synchronous>, transform_indices = @transform_7, window_bounds = array<i64: 32, 1>}, {pipeline_mode = #tpu.pipeline_mode<synchronous>, transform_indices = @transform_8, window_bounds = array<i64: 4, 32>}, {pipeline_mode = #tpu.pipeline_mode<synchronous>, transform_indices = @transform_9, window_bounds = array<i64: 1, 4>}, {transform_indices = @transform_10, window_bounds = array<i64: 8, 4>}]} {
    %c0 = arith.constant 0 : index
    %c0_0 = arith.constant 0 : index
    %0 = vector.load %arg2[%c0, %c0_0] : memref<16x16xf32, #tpu.memory_space<vmem>>, vector<16x16xf32>
    %1 = arith.truncf %0 : vector<16x16xf32> to vector<16x16xbf16>
    %c0_1 = arith.constant 0 : index
    %c0_2 = arith.constant 0 : index
    %2 = vector.load %arg1[%c0_1, %c0_2] : memref<8x16xf32, #tpu.memory_space<vmem>>, vector<8x16xf32>
    %3 = arith.truncf %2 : vector<8x16xf32> to vector<8x16xbf16>
    %cst = arith.constant dense<0.000000e+00> : vector<16x8xf32>
    %4 = tpu.matmul %1, %3, %cst {dimension_numbers = #tpu.dot_dimension_numbers<[1], [1], [0], [0], [0, 0, 1, 0], [], []>} : vector<16x16xbf16>, vector<8x16xbf16>, vector<16x8xf32> -> vector<16x8xf32>
    %c0_3 = arith.constant 0 : index
    %c0_4 = arith.constant 0 : index
    %5 = vector.load %arg3[%c0_3, %c0_4] : memref<32x16xf32, #tpu.memory_space<vmem>>, vector<32x16xf32>
    %6 = arith.truncf %5 : vector<32x16xf32> to vector<32x16xbf16>
    %7 = arith.truncf %4 : vector<16x8xf32> to vector<16x8xbf16>
    %cst_5 = arith.constant dense<0.000000e+00> : vector<32x8xf32>
    %8 = tpu.matmul %6, %7, %cst_5 {dimension_numbers = #tpu.dot_dimension_numbers<[1], [0], [0], [1], [0, 0, 1, 1], [], []>} : vector<32x16xbf16>, vector<16x8xbf16>, vector<32x8xf32> -> vector<32x8xf32>
    %c0_6 = arith.constant 0 : index
    %c0_7 = arith.constant 0 : index
    %9 = vector.load %arg4[%c0_6, %c0_7] : memref<32x1xf32, #tpu.memory_space<vmem>>, vector<32x1xf32>
    %10 = vector.broadcast %9 : vector<32x1xf32> to vector<32x8xf32>
    %11 = arith.addf %8, %10 : vector<32x8xf32>
    %cst_8 = arith.constant 0.000000e+00 : f32
    %12 = vector.broadcast %cst_8 : f32 to vector<32x8xf32>
    %13 = arith.maximumf %11, %12 : vector<32x8xf32>
    %c0_9 = arith.constant 0 : index
    %c0_10 = arith.constant 0 : index
    %14 = vector.load %arg5[%c0_9, %c0_10] : memref<16x32xf32, #tpu.memory_space<vmem>>, vector<16x32xf32>
    %15 = arith.truncf %14 : vector<16x32xf32> to vector<16x32xbf16>
    %16 = arith.truncf %13 : vector<32x8xf32> to vector<32x8xbf16>
    %cst_11 = arith.constant dense<0.000000e+00> : vector<16x8xf32>
    %17 = tpu.matmul %15, %16, %cst_11 {dimension_numbers = #tpu.dot_dimension_numbers<[1], [0], [0], [1], [0, 0, 1, 1], [], []>} : vector<16x32xbf16>, vector<32x8xbf16>, vector<16x8xf32> -> vector<16x8xf32>
    %c0_12 = arith.constant 0 : index
    %c0_13 = arith.constant 0 : index
    %18 = vector.load %arg6[%c0_12, %c0_13] : memref<16x1xf32, #tpu.memory_space<vmem>>, vector<16x1xf32>
    %19 = vector.broadcast %18 : vector<16x1xf32> to vector<16x8xf32>
    %20 = arith.addf %17, %19 : vector<16x8xf32>
    %21 = math.tanh %20 : vector<16x8xf32>
    %22 = arith.mulf %4, %21 : vector<16x8xf32>
    %c0_14 = arith.constant 0 : index
    %c0_15 = arith.constant 0 : index
    %23 = vector.load %arg7[%c0_14, %c0_15] : memref<32x16xf32, #tpu.memory_space<vmem>>, vector<32x16xf32>
    %24 = arith.truncf %23 : vector<32x16xf32> to vector<32x16xbf16>
    %25 = arith.truncf %22 : vector<16x8xf32> to vector<16x8xbf16>
    %cst_16 = arith.constant dense<0.000000e+00> : vector<32x8xf32>
    %26 = tpu.matmul %24, %25, %cst_16 {dimension_numbers = #tpu.dot_dimension_numbers<[1], [0], [0], [1], [0, 0, 1, 1], [], []>} : vector<32x16xbf16>, vector<16x8xbf16>, vector<32x8xf32> -> vector<32x8xf32>
    %c0_17 = arith.constant 0 : index
    %c0_18 = arith.constant 0 : index
    %27 = vector.load %arg8[%c0_17, %c0_18] : memref<32x1xf32, #tpu.memory_space<vmem>>, vector<32x1xf32>
    %28 = vector.broadcast %27 : vector<32x1xf32> to vector<32x8xf32>
    %29 = arith.addf %26, %28 : vector<32x8xf32>
    %cst_19 = arith.constant 0.000000e+00 : f32
    %30 = vector.broadcast %cst_19 : f32 to vector<32x8xf32>
    %31 = arith.maximumf %29, %30 : vector<32x8xf32>
    %32 = arith.truncf %31 : vector<32x8xf32> to vector<32x8xbf16>
    %c0_20 = arith.constant 0 : index
    %c0_21 = arith.constant 0 : index
    %33 = vector.load %arg9[%c0_20, %c0_21] : memref<4x32xf32, #tpu.memory_space<vmem>>, vector<4x32xf32>
    %34 = arith.truncf %33 : vector<4x32xf32> to vector<4x32xbf16>
    %cst_22 = arith.constant dense<0.000000e+00> : vector<8x4xf32>
    %35 = tpu.matmul %32, %34, %cst_22 {dimension_numbers = #tpu.dot_dimension_numbers<[0], [1], [1], [0], [0, 1, 1, 0], [], []>} : vector<32x8xbf16>, vector<4x32xbf16>, vector<8x4xf32> -> vector<8x4xf32>
    %c0_23 = arith.constant 0 : index
    %c0_24 = arith.constant 0 : index
    %36 = vector.load %arg10[%c0_23, %c0_24] : memref<1x4xf32, #tpu.memory_space<vmem>>, vector<1x4xf32>
    %37 = vector.broadcast %36 : vector<1x4xf32> to vector<8x4xf32>
    %38 = arith.addf %35, %37 : vector<8x4xf32>
    %c0_25 = arith.constant 0 : index
    %c0_26 = arith.constant 0 : index
    %39 = vector.load %arg11[%c0_25, %c0_26] : memref<8x4xf32, #tpu.memory_space<vmem>>, vector<8x4xf32>
    tpu.vector_store %arg11[%c0_25, %c0_26], %38 {strides = array<i32>} : memref<8x4xf32, #tpu.memory_space<vmem>>, vector<8x4xf32>,
    return
  }
  func.func @transform_0(%arg0: i32) -> (i32, i32) {
    %c0_i32 = arith.constant 0 : i32
    %c0_i32_0 = arith.constant 0 : i32
    return %arg0, %c0_i32 : i32, i32
  }
  func.func @transform_1(%arg0: i32) -> (i32, i32) {
    %c0_i32 = arith.constant 0 : i32
    %c0_i32_0 = arith.constant 0 : i32
    %c0_i32_1 = arith.constant 0 : i32
    return %c0_i32, %c0_i32_0 : i32, i32
  }
  func.func @transform_2(%arg0: i32) -> (i32, i32) {
    %c0_i32 = arith.constant 0 : i32
    %c0_i32_0 = arith.constant 0 : i32
    %c0_i32_1 = arith.constant 0 : i32
    return %c0_i32, %c0_i32_0 : i32, i32
  }
  func.func @transform_3(%arg0: i32) -> (i32, i32) {
    %c0_i32 = arith.constant 0 : i32
    %c0_i32_0 = arith.constant 0 : i32
    %c0_i32_1 = arith.constant 0 : i32
    return %c0_i32, %c0_i32_0 : i32, i32
  }
  func.func @transform_4(%arg0: i32) -> (i32, i32) {
    %c0_i32 = arith.constant 0 : i32
    %c0_i32_0 = arith.constant 0 : i32
    %c0_i32_1 = arith.constant 0 : i32
    return %c0_i32, %c0_i32_0 : i32, i32
  }
  func.func @transform_5(%arg0: i32) -> (i32, i32) {
    %c0_i32 = arith.constant 0 : i32
    %c0_i32_0 = arith.constant 0 : i32
    %c0_i32_1 = arith.constant 0 : i32
    return %c0_i32, %c0_i32_0 : i32, i32
  }
  func.func @transform_6(%arg0: i32) -> (i32, i32) {
    %c0_i32 = arith.constant 0 : i32
    %c0_i32_0 = arith.constant 0 : i32
    %c0_i32_1 = arith.constant 0 : i32
    return %c0_i32, %c0_i32_0 : i32, i32
  }
  func.func @transform_7(%arg0: i32) -> (i32, i32) {
    %c0_i32 = arith.constant 0 : i32
    %c0_i32_0 = arith.constant 0 : i32
    %c0_i32_1 = arith.constant 0 : i32
    return %c0_i32, %c0_i32_0 : i32, i32
  }
  func.func @transform_8(%arg0: i32) -> (i32, i32) {
    %c0_i32 = arith.constant 0 : i32
    %c0_i32_0 = arith.constant 0 : i32
    %c0_i32_1 = arith.constant 0 : i32
    return %c0_i32, %c0_i32_0 : i32, i32
  }
  func.func @transform_9(%arg0: i32) -> (i32, i32) {
    %c0_i32 = arith.constant 0 : i32
    %c0_i32_0 = arith.constant 0 : i32
    %c0_i32_1 = arith.constant 0 : i32
    return %c0_i32, %c0_i32_0 : i32, i32
  }
  func.func @transform_10(%arg0: i32) -> (i32, i32) {
    %c0_i32 = arith.constant 0 : i32
    %c0_i32_0 = arith.constant 0 : i32
    return %arg0, %c0_i32 : i32, i32
  }
}

</mosaic_0001>

<llo_original>
// kernel: tpu_custom_call.1
$region0: #{tpu_custom_call.1}
  #allocation0 [shape = 'u32[]', space=smem, size = 0x4, offset = 0x4, fixed_abs, tag = 'smem constant byte address 0x4 - core index']
  #allocation1 [shape = 'u32[72,128]{1,0:T(1,128)}', space=vmem, size = 0x9000, scoped, tag = 'internal scratch']
  %s0 = inlined_call_operand.vmem [shape: f32[8,16], index: 0, kind: input, shape index: {}]
  %s1 = inlined_call_operand.vmem [shape: f32[16,16], index: 1, kind: input, shape index: {}]
  %s2 = inlined_call_operand.vmem [shape: f32[32,16], index: 2, kind: input, shape index: {}]
  %s3 = inlined_call_operand.vmem [shape: f32[32,1], index: 3, kind: input, shape index: {}]
  %s4 = inlined_call_operand.vmem [shape: f32[16,32], index: 4, kind: input, shape index: {}]
  %s5 = inlined_call_operand.vmem [shape: f32[16,1], index: 5, kind: input, shape index: {}]
  %s6 = inlined_call_operand.vmem [shape: f32[32,16], index: 6, kind: input, shape index: {}]
  %s7 = inlined_call_operand.vmem [shape: f32[32,1], index: 7, kind: input, shape index: {}]
  %s8 = inlined_call_operand.vmem [shape: f32[4,32], index: 8, kind: input, shape index: {}]
  %s9 = inlined_call_operand.vmem [shape: f32[1,4], index: 9, kind: input, shape index: {}]
  %s10 = inlined_call_operand.vmem [shape: f32[8,4], index: 10, kind: output, shape index: {}]
  %s11 = sld [smem:[#allocation0]]
  $region50: #{tpu_custom_call.1} parent=0
    _
  %s13 = ssub.s32 1, %s11
  %s14 = scalar_select 0, %s13, %s11
  // Predicated region
  $region2: #{tpu_custom_call.1} parent=0 // pred_check
    _
  $region3: #{tpu_custom_call.1} parent=0 // pred_check_branch
    %16 = sbr.rel (0) target = $region5
  $region4: #{tpu_custom_call.1} parent=0 // pred_region
    _
  $region5: #{tpu_custom_call.1} parent=0 // pred_fallthru
    _
  // Predicated region
  $region6: #{tpu_custom_call.1} parent=0 // pred_check
    _
  $region7: #{tpu_custom_call.1} parent=0 // pred_check_branch
    %18 = sbr.rel (0) target = $region9
  $region8: #{tpu_custom_call.1} parent=0 // pred_region
    _
  $region9: #{tpu_custom_call.1} parent=0 // pred_fallthru
    _
  // Predicated region
  $region10: #{tpu_custom_call.1} parent=0 // pred_check
    _
  $region11: #{tpu_custom_call.1} parent=0 // pred_check_branch
    %20 = sbr.rel (0) target = $region13
  $region12: #{tpu_custom_call.1} parent=0 // pred_region
    _
  $region13: #{tpu_custom_call.1} parent=0 // pred_fallthru
    _
  // Predicated region
  $region14: #{tpu_custom_call.1} parent=0 // pred_check
    _
  $region15: #{tpu_custom_call.1} parent=0 // pred_check_branch
    %22 = sbr.rel (0) target = $region17
  $region16: #{tpu_custom_call.1} parent=0 // pred_region
    _
  $region17: #{tpu_custom_call.1} parent=0 // pred_fallthru
    _
  // Predicated region
  $region18: #{tpu_custom_call.1} parent=0 // pred_check
    _
  $region19: #{tpu_custom_call.1} parent=0 // pred_check_branch
    %24 = sbr.rel (0) target = $region21
  $region20: #{tpu_custom_call.1} parent=0 // pred_region
    _
  $region21: #{tpu_custom_call.1} parent=0 // pred_fallthru
    _
  // Predicated region
  $region22: #{tpu_custom_call.1} parent=0 // pred_check
    _
  $region23: #{tpu_custom_call.1} parent=0 // pred_check_branch
    %26 = sbr.rel (0) target = $region25
  $region24: #{tpu_custom_call.1} parent=0 // pred_region
    _
  $region25: #{tpu_custom_call.1} parent=0 // pred_fallthru
    _
  // Predicated region
  $region26: #{tpu_custom_call.1} parent=0 // pred_check
    _
  $region27: #{tpu_custom_call.1} parent=0 // pred_check_branch
    %28 = sbr.rel (0) target = $region29
  $region28: #{tpu_custom_call.1} parent=0 // pred_region
    _
  $region29: #{tpu_custom_call.1} parent=0 // pred_fallthru
    _
  // Predicated region
  $region30: #{tpu_custom_call.1} parent=0 // pred_check
    _
  $region31: #{tpu_custom_call.1} parent=0 // pred_check_branch
    %30 = sbr.rel (0) target = $region33
  $region32: #{tpu_custom_call.1} parent=0 // pred_region
    _
  $region33: #{tpu_custom_call.1} parent=0 // pred_fallthru
    _
  // Predicated region
  $region34: #{tpu_custom_call.1} parent=0 // pred_check
    _
  $region35: #{tpu_custom_call.1} parent=0 // pred_check_branch
    %32 = sbr.rel (0) target = $region37
  $region36: #{tpu_custom_call.1} parent=0 // pred_region
    _
  $region37: #{tpu_custom_call.1} parent=0 // pred_fallthru
    _
  // Predicated region
  $region38: #{tpu_custom_call.1} parent=0 // pred_check
    _
  $region39: #{tpu_custom_call.1} parent=0 // pred_check_branch
    %34 = sbr.rel (0) target = $region41
  $region40: #{tpu_custom_call.1} parent=0 // pred_region
    _
  $region41: #{tpu_custom_call.1} parent=0 // pred_fallthru
    _
  %v36 = vld [vmem:[%s1] sm:$0xff]
  %v37 = vld [vmem:[%s1 + $0x8] sm:$0xff]
  %v38 = vpack.c.bf16 %v37, %v36
  %v39 = vld [vmem:[%s0] sm:$0xff]
  %v40 = vpack.c.bf16 %v39, %v39
  %vm41 = vcmask 130048
  %v43 = vsel %vm41, %v38, 0
  %v46 = vsel %vm41, %v40, 0
  %48 = vmatpush.bf16.xpose.msra.mxu0 0
  %49 = vmatpush.bf16.xpose.msra.mxu0 0
  %50 = vmatpush.bf16.xpose.msra.mxu0 0
  %51 = vmatpush.bf16.xpose.msra.mxu0 0
  %52 = vmatpush.bf16.xpose.msra.mxu0 0
  %53 = vmatpush.bf16.xpose.msra.mxu0 0
  %54 = vmatpush.bf16.xpose.msra.mxu0 0
  %55 = vmatpush.bf16.xpose.msra.mxu0 %v46
  %56 = vmatmul.bf16.gmra.mxu0 %v43
  %v57 = vpop.f32.mrf.mxu0
  %v58 = vadd.f32 0.0, %v57
  %v59 = vpop.f32.mrf.mxu0
  %v60 = vadd.f32 0.0, %v59
  %61 = vdwg.mxu0
  %v62 = vld [vmem:[%s2] sm:$0xff]
  %v63 = vld [vmem:[%s2 + $0x8] sm:$0xff]
  %v64 = vld [vmem:[%s2 + $0x10] sm:$0xff]
  %v65 = vld [vmem:[%s2 + $0x18] sm:$0xff]
  %v66 = vpack.c.bf16 %v63, %v62
  %v67 = vpack.c.bf16 %v65, %v64
  %v68 = vpack.c.bf16 %v60, %v58
  %v69 = vld [vmem:[%s3] sm:$0xff]
  %v70 = vld [vmem:[%s3 + $0x8] sm:$0xff]
  %v71 = vld [vmem:[%s3 + $0x10] sm:$0xff]
  %v72 = vld [vmem:[%s3 + $0x18] sm:$0xff]
  %74 = vset.pattern.permute.xlu0 0
  %75 = vperm.xlu0 %74, %v69
  %v76 = vpop.permute.xlu0 %75
  %79 = vset.pattern.permute.xlu0 0
  %80 = vperm.xlu0 %79, %v70
  %v81 = vpop.permute.xlu0 %80
  %84 = vset.pattern.permute.xlu0 0
  %85 = vperm.xlu0 %84, %v71
  %v86 = vpop.permute.xlu0 %85
  %89 = vset.pattern.permute.xlu0 0
  %90 = vperm.xlu0 %89, %v72
  %v91 = vpop.permute.xlu0 %90
  %v94 = vsel %vm41, %v66, 0
  %v97 = vsel %vm41, %v67, 0
  %99 = vmatpush.bf16.msra.mxu0 0
  %100 = vmatpush.bf16.msra.mxu0 0
  %101 = vmatpush.bf16.msra.mxu0 0
  %102 = vmatpush.bf16.msra.mxu0 0
  %103 = vmatpush.bf16.msra.mxu0 0
  %104 = vmatpush.bf16.msra.mxu0 0
  %105 = vmatpush.bf16.msra.mxu0 0
  %106 = vmatpush.bf16.msra.mxu0 %v68
  %107 = vmatmul.bf16.gmra.mxu0 %v94
  %v108 = vpop.f32.mrf.mxu0
  %v109 = vadd.f32 %v76, %v108
  %v110 = vpop.f32.mrf.mxu0
  %v111 = vadd.f32 %v81, %v110
  %112 = vmatmul.bf16.gmra.mxu0 %v97
  %v113 = vpop.f32.mrf.mxu0
  %v114 = vadd.f32 %v86, %v113
  %v115 = vpop.f32.mrf.mxu0
  %v116 = vadd.f32 %v91, %v115
  %117 = vdwg.mxu0
  %v118 = vmax.f32 %v109, 0.0
  %v119 = vmax.f32 %v111, 0.0
  %v120 = vmax.f32 %v114, 0.0
  %v121 = vmax.f32 %v116, 0.0
  %v122 = vld [vmem:[%s4] sm:$0xff]
  %v123 = vld [vmem:[%s4 + $0x8] sm:$0xff]
  %v124 = vpack.c.bf16 %v123, %v122
  %v125 = vpack.c.bf16 %v119, %v118
  %v126 = vpack.c.bf16 %v121, %v120
  %v127 = vld [vmem:[%s5] sm:$0xff]
  %v128 = vld [vmem:[%s5 + $0x8] sm:$0xff]
  %130 = vset.pattern.permute.xlu0 0
  %131 = vperm.xlu0 %130, %v127
  %v132 = vpop.permute.xlu0 %131
  %135 = vset.pattern.permute.xlu0 0
  %136 = vperm.xlu0 %135, %v128
  %v137 = vpop.permute.xlu0 %136
  %vm139 = vcmask 261120
  %v141 = vsel %vm139, %v124, 0
  %143 = vmatpush.bf16.msra.mxu0 0
  %144 = vmatpush.bf16.msra.mxu0 0
  %145 = vmatpush.bf16.msra.mxu0 0
  %146 = vmatpush.bf16.msra.mxu0 0
  %147 = vmatpush.bf16.msra.mxu0 0
  %148 = vmatpush.bf16.msra.mxu0 0
  %149 = vmatpush.bf16.msra.mxu0 %v126
  %150 = vmatpush.bf16.msra.mxu0 %v125
  %151 = vmatmul.bf16.gmra.mxu0 %v141
  %v152 = vpop.f32.mrf.mxu0
  %v153 = vadd.f32 %v132, %v152
  %v154 = vpop.f32.mrf.mxu0
  %v155 = vadd.f32 %v137, %v154
  %156 = vdwg.mxu0
  %v157 = vtanh.pop %v153
  %v158 = vtanh.pop %v155
  %v159 = vmul.f32 %v58, %v157
  %v160 = vmul.f32 %v60, %v158
  %v161 = vld [vmem:[%s6] sm:$0xff]
  %v162 = vld [vmem:[%s6 + $0x8] sm:$0xff]
  %v163 = vld [vmem:[%s6 + $0x10] sm:$0xff]
  %v164 = vld [vmem:[%s6 + $0x18] sm:$0xff]
  %v165 = vpack.c.bf16 %v162, %v161
  %v166 = vpack.c.bf16 %v164, %v163
  %v167 = vpack.c.bf16 %v160, %v159
  %v168 = vld [vmem:[%s7] sm:$0xff]
  %v169 = vld [vmem:[%s7 + $0x8] sm:$0xff]
  %v170 = vld [vmem:[%s7 + $0x10] sm:$0xff]
  %v171 = vld [vmem:[%s7 + $0x18] sm:$0xff]
  %173 = vset.pattern.permute.xlu0 0
  %174 = vperm.xlu0 %173, %v168
  %v175 = vpop.permute.xlu0 %174
  %178 = vset.pattern.permute.xlu0 0
  %179 = vperm.xlu0 %178, %v169
  %v180 = vpop.permute.xlu0 %179
  %183 = vset.pattern.permute.xlu0 0
  %184 = vperm.xlu0 %183, %v170
  %v185 = vpop.permute.xlu0 %184
  %188 = vset.pattern.permute.xlu0 0
  %189 = vperm.xlu0 %188, %v171
  %v190 = vpop.permute.xlu0 %189
  %v193 = vsel %vm41, %v165, 0
  %v196 = vsel %vm41, %v166, 0
  %198 = vmatpush.bf16.msra.mxu0 0
  %199 = vmatpush.bf16.msra.mxu0 0
  %200 = vmatpush.bf16.msra.mxu0 0
  %201 = vmatpush.bf16.msra.mxu0 0
  %202 = vmatpush.bf16.msra.mxu0 0
  %203 = vmatpush.bf16.msra.mxu0 0
  %204 = vmatpush.bf16.msra.mxu0 0
  %205 = vmatpush.bf16.msra.mxu0 %v167
  %206 = vmatmul.bf16.gmra.mxu0 %v193
  %v207 = vpop.f32.mrf.mxu0
  %v208 = vadd.f32 %v175, %v207
  %v209 = vpop.f32.mrf.mxu0
  %v210 = vadd.f32 %v180, %v209
  %211 = vmatmul.bf16.gmra.mxu0 %v196
  %v212 = vpop.f32.mrf.mxu0
  %v213 = vadd.f32 %v185, %v212
  %v214 = vpop.f32.mrf.mxu0
  %v215 = vadd.f32 %v190, %v214
  %216 = vdwg.mxu0
  %v217 = vmax.f32 %v208, 0.0
  %v218 = vmax.f32 %v210, 0.0
  %v219 = vmax.f32 %v213, 0.0
  %v220 = vmax.f32 %v215, 0.0
  %v221 = vpack.c.bf16 %v218, %v217
  %v222 = vpack.c.bf16 %v220, %v219
  %v223 = vld [vmem:[%s8] sm:$0xf]
  %v224 = vpack.c.bf16 %v223, %v223
  %v225 = vld [vmem:[%s9] sm:$0x1]
  %v227 = vperm.slane %v225, 0
  %229 = vxpose.xlu0.c.b16.start [1/8] %v221, 128
  %230 = vxpose.xlu0.c.b16.cont [2/8] %v222, 128
  %231 = vxpose.xlu0.c.b16.cont [3/8] 0, 128
  %232 = vxpose.xlu0.c.b16.cont [4/8] 0, 128
  %233 = vxpose.xlu0.c.b16.cont [5/8] 0, 128
  %234 = vxpose.xlu0.c.b16.cont [6/8] 0, 128
  %235 = vxpose.xlu0.c.b16.cont [7/8] 0, 128
  %236 = vxpose.xlu0.c.b16.end [8/8] 0, 128
  %v237 = vpop.trf.xlu0
  %v238 = vpop.trf.xlu0
  %v239 = vpop.trf.xlu0
  %v240 = vpop.trf.xlu0
  %v241 = vpop.trf.xlu0
  %v242 = vpop.trf.xlu0
  %v243 = vpop.trf.xlu0
  %v244 = vpop.trf.xlu0
  %v246 = vsel %vm139, %v237, 0
  %v249 = vsel %vm139, %v224, 0
  %251 = vmatpush.bf16.xpose.msra.mxu0 0
  %252 = vmatpush.bf16.xpose.msra.mxu0 0
  %253 = vmatpush.bf16.xpose.msra.mxu0 0
  %254 = vmatpush.bf16.xpose.msra.mxu0 0
  %255 = vmatpush.bf16.xpose.msra.mxu0 0
  %256 = vmatpush.bf16.xpose.msra.mxu0 0
  %257 = vmatpush.bf16.xpose.msra.mxu0 0
  %258 = vmatpush.bf16.xpose.msra.mxu0 %v249
  %259 = vmatmul.bf16.gmra.mxu0 %v246
  %v260 = vpop.f32.mrf.mxu0
  %v261 = vadd.f32 %v227, %v260
  %v262 = vpop.f32.mrf.mxu0
  %263 = vdwg.mxu0
  %vm264 = vcmask 31744
  %265 = vst.msk [vmem:[%s10] sm:$0xff] %vm264, %v261
  // Predicated region
  $region42: #{tpu_custom_call.1} parent=0 // pred_check
    _
  $region43: #{tpu_custom_call.1} parent=0 // pred_check_branch
    %267 = sbr.rel (0) target = $region45
  $region44: #{tpu_custom_call.1} parent=0 // pred_region
    _
  $region45: #{tpu_custom_call.1} parent=0 // pred_fallthru
    _
  // Predicated region
  $region46: #{tpu_custom_call.1} parent=0 // pred_check
    _
  $region47: #{tpu_custom_call.1} parent=0 // pred_check_branch
    %269 = sbr.rel (0) target = $region49
  $region48: #{tpu_custom_call.1} parent=0 // pred_region
    _
  $region49: #{tpu_custom_call.1} parent=0 // pred_fallthru
    _

</llo_original>
